<compile_context>
chip_gen: v5e
topology: v5e:2x2
jax: 0.10.0
libtpu: 0.0.40
codegen_flags: <defaults>
</compile_context>

<pallas_src>
import functools

import jax
import jax.numpy as jnp
from jax.experimental import pallas as pl
from jax.experimental.pallas import tpu as pltpu


def _attention_kernel(x_ref, w1_ref, b1_ref, w2_ref, out_ref, s_scratch, *, num_tiles):
    # x_ref:    (TM, E)  current tile of input rows
    # w1_ref:   (16, E)  torch Linear(E,16).weight (resident)
    # b1_ref:   (16, 1)  torch Linear(E,16).bias as a column (resident)
    # w2_ref:   (16, 1)  torch Linear(16,1).weight as a column (resident; b2 cancels)
    # out_ref:  (1, N)   lane-dense output block, resident across the grid
    # s_scratch:(num_tiles, 1, TM) raw scores, persistent across grid steps
    i = pl.program_id(0)

    # Linear(E,16): contract both operands on their last (E) axis -> (16, TM); rows land on lanes.
    h = jax.lax.dot_general(
        w1_ref[...], x_ref[...],
        dimension_numbers=(((1,), (1,)), ((), ())),
        preferred_element_type=jnp.float32,
    )
    h = jnp.maximum(h + b1_ref[...], 0.0)  # bias + ReLU; Dropout(p=0) is identity

    # Linear(16,1) as a VPU multiply + sublane reduce (avoids a degenerate 1-lane MXU matmul).
    s_scratch[i] = jnp.sum(h * w2_ref[...], axis=0, keepdims=True)  # (1, TM)

    # Last step: softmax over all N scores, single lane-dense write of the (1, N) output.
    @pl.when(i == num_tiles - 1)
    def _():
        if num_tiles == 1:
            s_all = s_scratch[0]                                           # (1, N)
        else:
            s_all = jnp.concatenate(
                [s_scratch[g] for g in range(num_tiles)], axis=-1)         # (1, N)
        m = jnp.max(s_all, axis=-1, keepdims=True)
        e = jnp.exp(s_all - m)
        denom = jnp.sum(e, axis=-1, keepdims=True)
        out_ref[...] = e * pl.reciprocal(denom, approx=True)


def attention_layer(x, w1, b1, w2, b2=None, *, tm=4096):
    """AttentionLayer forward.

    x : (N, E) float32
    w1: (16, E), b1: (16,)  -- torch nn.Linear(E, 16) parameters (native layout)
    w2: (1, 16), b2: (1,)   -- torch nn.Linear(16, 1) parameters (b2 accepted but unused:
                               softmax(s + c) == softmax(s))
    returns (1, N) attention weights == torch.softmax(out.view(1, -1), dim=1)
    """
    del b2  # mathematically cancels under softmax
    n, e = x.shape
    if n % tm != 0:
        tm = n  # single-tile fallback for toy / ragged N
        # TODO(synk): pad N to a multiple of 128 (mask padded scores to -inf) so large ragged N
        # can still use the multi-tile pipelined path.
    num_tiles = n // tm

    b1_col = b1.reshape(16, 1).astype(jnp.float32)
    w2_col = w2.reshape(16, 1).astype(jnp.float32)

    kernel = functools.partial(_attention_kernel, num_tiles=num_tiles)
    return pl.pallas_call(
        kernel,
        out_shape=jax.ShapeDtypeStruct((1, n), jnp.float32),
        grid_spec=pltpu.PrefetchScalarGridSpec(
            num_scalar_prefetch=0,
            grid=(num_tiles,),
            in_specs=[
                pl.BlockSpec((tm, e), lambda i: (i, 0)),   # x rows streamed over the grid
                pl.BlockSpec((16, e), lambda i: (0, 0)),   # w1 resident
                pl.BlockSpec((16, 1), lambda i: (0, 0)),   # b1 resident
                pl.BlockSpec((16, 1), lambda i: (0, 0)),   # w2 resident
            ],
            out_specs=pl.BlockSpec((1, n), lambda i: (0, 0)),  # lane-dense, resident
            scratch_shapes=[pltpu.VMEM((num_tiles, 1, tm), jnp.float32)],
        ),
        compiler_params=pltpu.CompilerParams(
            dimension_semantics=("arbitrary",),   # softmax couples all N tiles
            vmem_limit_bytes=32 * 1024 * 1024,
        ),
    )(x.astype(jnp.float32), w1.astype(jnp.float32), b1_col, w2_col)


def _reference(x, w1, b1, w2, b2):
    h = jnp.maximum(x @ w1.T + b1, 0.0)
    s = (h @ w2.T + b2).reshape(1, -1)
    return jax.nn.softmax(s, axis=1)


if __name__ == "__main__":
    N, E = 8, 32  # seq = 8 tokens, embedding_dim = 32

    key = jax.random.PRNGKey(0)
    kx, k1, k2, k3, k4 = jax.random.split(key, 5)

    x = jax.random.normal(kx, (N, E), dtype=jnp.float32)
    # torch-native parameter layouts:
    #   Linear(E,16).weight (16,E), .bias (16,);  Linear(16,1).weight (1,16), .bias (1,)
    w1 = jax.random.normal(k1, (16, E), dtype=jnp.float32) * 0.1
    b1 = jax.random.normal(k2, (16,), dtype=jnp.float32) * 0.1
    w2 = jax.random.normal(k3, (1, 16), dtype=jnp.float32) * 0.1
    b2 = jax.random.normal(k4, (1,), dtype=jnp.float32) * 0.1

    out = attention_layer(x, w1, b1, w2, b2)
    jax.block_until_ready(out)

    ref = _reference(x, w1, b1, w2, b2)
    assert out.shape == (1, N), out.shape
    # tolerances loosened slightly for pl.reciprocal(approx=True)
    assert jnp.allclose(out, ref, atol=2e-3, rtol=2e-3), (out, ref)
    assert jnp.allclose(jnp.sum(out), 1.0, atol=2e-3)

    print("KERNEL_OK")
</pallas_src>

<mosaic_0001>
module attributes {stable_mosaic.version = 11 : i64} {
  func.func @_attention_kernel(%arg0: i32, %arg1: memref<8x32xf32, #tpu.memory_space<vmem>>, %arg2: memref<16x32xf32, #tpu.memory_space<vmem>>, %arg3: memref<16x1xf32, #tpu.memory_space<vmem>>, %arg4: memref<16x1xf32, #tpu.memory_space<vmem>>, %arg5: memref<1x8xf32, #tpu.memory_space<vmem>>, %arg6: memref<1x1x8xf32, #tpu.memory_space<vmem>>) attributes {dimension_semantics = [#tpu.dimension_semantics<arbitrary>], iteration_bounds = array<i64: 1>, scalar_prefetch = 0 : i64, scratch_operands = 1 : i64, tpu.core_type = #tpu.core_type<tc>, window_params = [{transform_indices = @transform_0, window_bounds = array<i64: 8, 32>}, {pipeline_mode = #tpu.pipeline_mode<synchronous>, transform_indices = @transform_1, window_bounds = array<i64: 16, 32>}, {pipeline_mode = #tpu.pipeline_mode<synchronous>, transform_indices = @transform_2, window_bounds = array<i64: 16, 1>}, {pipeline_mode = #tpu.pipeline_mode<synchronous>, transform_indices = @transform_3, window_bounds = array<i64: 16, 1>}, {pipeline_mode = #tpu.pipeline_mode<synchronous>, transform_indices = @transform_4, window_bounds = array<i64: 1, 8>}]} {
    %c0 = arith.constant 0 : index
    %c0_0 = arith.constant 0 : index
    %0 = vector.load %arg2[%c0, %c0_0] : memref<16x32xf32, #tpu.memory_space<vmem>>, vector<16x32xf32>
    %c0_1 = arith.constant 0 : index
    %c0_2 = arith.constant 0 : index
    %1 = vector.load %arg1[%c0_1, %c0_2] : memref<8x32xf32, #tpu.memory_space<vmem>>, vector<8x32xf32>
    %cst = arith.constant dense<0.000000e+00> : vector<16x8xf32>
    %2 = tpu.matmul %0, %1, %cst {dimension_numbers = #tpu.dot_dimension_numbers<[1], [1], [0], [0], [0, 0, 1, 0], [], []>} : vector<16x32xf32>, vector<8x32xf32>, vector<16x8xf32> -> vector<16x8xf32>
    %c0_3 = arith.constant 0 : index
    %c0_4 = arith.constant 0 : index
    %3 = vector.load %arg3[%c0_3, %c0_4] : memref<16x1xf32, #tpu.memory_space<vmem>>, vector<16x1xf32>
    %4 = vector.broadcast %3 : vector<16x1xf32> to vector<16x8xf32>
    %5 = arith.addf %2, %4 : vector<16x8xf32>
    %cst_5 = arith.constant 0.000000e+00 : f32
    %6 = vector.broadcast %cst_5 : f32 to vector<16x8xf32>
    %7 = arith.maximumf %5, %6 : vector<16x8xf32>
    %c0_6 = arith.constant 0 : index
    %c0_7 = arith.constant 0 : index
    %8 = vector.load %arg4[%c0_6, %c0_7] : memref<16x1xf32, #tpu.memory_space<vmem>>, vector<16x1xf32>
    %9 = vector.broadcast %8 : vector<16x1xf32> to vector<16x8xf32>
    %10 = arith.mulf %7, %9 : vector<16x8xf32>
    %cst_8 = arith.constant dense<0.000000e+00> : vector<8xf32>
    %11 = vector.multi_reduction <add>, %10, %cst_8 [0] : vector<16x8xf32> to vector<8xf32>
    %12 = vector.shape_cast %11 : vector<8xf32> to vector<1x8xf32>
    %13 = arith.index_cast %arg0 : i32 to index
    %c0_9 = arith.constant 0 : index
    %c0_10 = arith.constant 0 : index
    %14 = vector.load %arg6[%13, %c0_9, %c0_10] : memref<1x1x8xf32, #tpu.memory_space<vmem>>, vector<1x1x8xf32>
    %15 = vector.shape_cast %14 : vector<1x1x8xf32> to vector<1x8xf32>
    %16 = vector.shape_cast %12 : vector<1x8xf32> to vector<1x1x8xf32>
    tpu.vector_store %arg6[%13, %c0_9, %c0_10], %16 {strides = array<i32>} : memref<1x1x8xf32, #tpu.memory_space<vmem>>, vector<1x1x8xf32>,
    %c0_i32 = arith.constant 0 : i32
    %17 = arith.cmpi eq, %arg0, %c0_i32 : i32
    %18 = arith.extui %17 : i1 to i32
    %c0_i32_11 = arith.constant 0 : i32
    %19 = arith.cmpi ne, %18, %c0_i32_11 : i32
    scf.if %19 {
      %c0_12 = arith.constant 0 : index
      %c0_13 = arith.constant 0 : index
      %c0_14 = arith.constant 0 : index
      %20 = vector.load %arg6[%c0_12, %c0_13, %c0_14] : memref<1x1x8xf32, #tpu.memory_space<vmem>>, vector<1x1x8xf32>
      %21 = vector.shape_cast %20 : vector<1x1x8xf32> to vector<1x8xf32>
      %cst_15 = arith.constant dense<0xFF800000> : vector<1xf32>
      %22 = vector.multi_reduction <maximumf>, %21, %cst_15 [1] : vector<1x8xf32> to vector<1xf32>
      %23 = vector.shape_cast %22 : vector<1xf32> to vector<1x1xf32>
      %24 = vector.broadcast %23 : vector<1x1xf32> to vector<1x8xf32>
      %25 = arith.subf %21, %24 : vector<1x8xf32>
      %26 = math.exp %25 : vector<1x8xf32>
      %cst_16 = arith.constant dense<0.000000e+00> : vector<1xf32>
      %27 = vector.multi_reduction <add>, %26, %cst_16 [1] : vector<1x8xf32> to vector<1xf32>
      %28 = vector.shape_cast %27 : vector<1xf32> to vector<1x1xf32>
      %29 = tpu.reciprocal %28 {approx = true} : vector<1x1xf32> -> vector<1x1xf32>
      %30 = vector.broadcast %29 : vector<1x1xf32> to vector<1x8xf32>
      %31 = arith.mulf %26, %30 : vector<1x8xf32>
      %c0_17 = arith.constant 0 : index
      %c0_18 = arith.constant 0 : index
      %32 = vector.load %arg5[%c0_17, %c0_18] : memref<1x8xf32, #tpu.memory_space<vmem>>, vector<1x8xf32>
      tpu.vector_store %arg5[%c0_17, %c0_18], %31 {strides = array<i32>} : memref<1x8xf32, #tpu.memory_space<vmem>>, vector<1x8xf32>,
    } else {
    }
    return
  }
  func.func @transform_0(%arg0: i32) -> (i32, i32) {
    %c0_i32 = arith.constant 0 : i32
    %c0_i32_0 = arith.constant 0 : i32
    return %arg0, %c0_i32 : i32, i32
  }
  func.func @transform_1(%arg0: i32) -> (i32, i32) {
    %c0_i32 = arith.constant 0 : i32
    %c0_i32_0 = arith.constant 0 : i32
    %c0_i32_1 = arith.constant 0 : i32
    return %c0_i32, %c0_i32_0 : i32, i32
  }
  func.func @transform_2(%arg0: i32) -> (i32, i32) {
    %c0_i32 = arith.constant 0 : i32
    %c0_i32_0 = arith.constant 0 : i32
    %c0_i32_1 = arith.constant 0 : i32
    return %c0_i32, %c0_i32_0 : i32, i32
  }
  func.func @transform_3(%arg0: i32) -> (i32, i32) {
    %c0_i32 = arith.constant 0 : i32
    %c0_i32_0 = arith.constant 0 : i32
    %c0_i32_1 = arith.constant 0 : i32
    return %c0_i32, %c0_i32_0 : i32, i32
  }
  func.func @transform_4(%arg0: i32) -> (i32, i32) {
    %c0_i32 = arith.constant 0 : i32
    %c0_i32_0 = arith.constant 0 : i32
    %c0_i32_1 = arith.constant 0 : i32
    return %c0_i32, %c0_i32_0 : i32, i32
  }
}

</mosaic_0001>

<llo_original>
// kernel: tpu_custom_call.1
$region0: #{tpu_custom_call.1}
  #allocation0 [shape = 'u32[]', space=smem, size = 0x4, offset = 0x4, fixed_abs, tag = 'smem constant byte address 0x4 - core index']
  #allocation1 [shape = 'u32[72,128]{1,0:T(1,128)}', space=vmem, size = 0x9000, scoped, tag = 'internal scratch']
  #allocation2 [shape = 'f32[1,1,8]{2,1,0:T(1,128)}', space=vmem, size = 0x200, scoped, tag = 'scratch operand']
  %s0 = inlined_call_operand.vmem [shape: f32[8,32], index: 0, kind: input, shape index: {}]
  %s1 = inlined_call_operand.vmem [shape: f32[16,32], index: 1, kind: input, shape index: {}]
  %s2 = inlined_call_operand.vmem [shape: f32[16,1], index: 2, kind: input, shape index: {}]
  %s3 = inlined_call_operand.vmem [shape: f32[16,1], index: 3, kind: input, shape index: {}]
  %s4 = inlined_call_operand.hbm [shape: f32[1,8], index: 4, kind: output, shape index: {}]
  %s5 = sld [smem:[#allocation0]]
  $region30: #{tpu_custom_call.1} parent=0
    _
  %s7 = ssub.s32 1, %s5
  %s8 = scalar_select 0, %s7, %s5
  $region1: #{tpu_custom_call.1} parent=0
    #allocation3 [shape = 'u8[512]{0}', space=vmem, size = 0x400, scoped, tag = 'output window, operand 0, single buffered']
    #allocation4 [shape = 's32[1]{0}', space=sflag, size = 0x4, scoped, tag = 'scoped memory for tpu_custom_call.1']
    %9 = vsyncpa [#allocation4], 0
    // Predicated region
    $region2: #{tpu_custom_call.1} parent=1 // pred_check
      _
    $region3: #{tpu_custom_call.1} parent=1 // pred_check_branch
      %11 = sbr.rel (0) target = $region5
    $region4: #{tpu_custom_call.1} parent=1 // pred_region
      _
    $region5: #{tpu_custom_call.1} parent=1 // pred_fallthru
      _
    // Predicated region
    $region6: #{tpu_custom_call.1} parent=1 // pred_check
      _
    $region7: #{tpu_custom_call.1} parent=1 // pred_check_branch
      %13 = sbr.rel (0) target = $region9
    $region8: #{tpu_custom_call.1} parent=1 // pred_region
      _
    $region9: #{tpu_custom_call.1} parent=1 // pred_fallthru
      _
    // Predicated region
    $region10: #{tpu_custom_call.1} parent=1 // pred_check
      _
    $region11: #{tpu_custom_call.1} parent=1 // pred_check_branch
      %15 = sbr.rel (0) target = $region13
    $region12: #{tpu_custom_call.1} parent=1 // pred_region
      _
    $region13: #{tpu_custom_call.1} parent=1 // pred_fallthru
      _
    // Predicated region
    $region14: #{tpu_custom_call.1} parent=1 // pred_check
      _
    $region15: #{tpu_custom_call.1} parent=1 // pred_check_branch
      %17 = sbr.rel (0) target = $region17
    $region16: #{tpu_custom_call.1} parent=1 // pred_region
      _
    $region17: #{tpu_custom_call.1} parent=1 // pred_fallthru
      _
    %v18 = vld [vmem:[%s1] sm:$0xff]
    %v19 = vld [vmem:[%s1 + $0x8] sm:$0xff]
    %v20 = vld [vmem:[%s0] sm:$0xff]
    %v21 = vld [vmem:[%s2] sm:$0xff]
    %v22 = vld [vmem:[%s2 + $0x8] sm:$0xff]
    %24 = vset.pattern.permute.xlu0 0
    %25 = vperm.xlu0 %24, %v21
    %v26 = vpop.permute.xlu0 %25
    %29 = vset.pattern.permute.xlu0 0
    %30 = vperm.xlu0 %29, %v22
    %v31 = vpop.permute.xlu0 %30
    %vm33 = vcmask 261120
    %v35 = vsel %vm33, %v18, 0
    %v38 = vsel %vm33, %v19, 0
    %v41 = vsel %vm33, %v20, 0
    %43 = vmatpush.xpose.msra.mxu0 0.0
    %44 = vmatpush.xpose.msra.mxu0 0.0
    %45 = vmatpush.xpose.msra.mxu0 0.0
    %46 = vmatpush.xpose.msra.mxu0 0.0
    %47 = vmatpush.xpose.msra.mxu0 0.0
    %48 = vmatpush.xpose.msra.mxu0 0.0
    %49 = vmatpush.xpose.msra.mxu0 0.0
    %50 = vmatpush.xpose.msra.mxu0 0.0
    %51 = vmatpush.xpose.msra.mxu0 0.0
    %52 = vmatpush.xpose.msra.mxu0 0.0
    %53 = vmatpush.xpose.msra.mxu0 0.0
    %54 = vmatpush.xpose.msra.mxu0 0.0
    %55 = vmatpush.xpose.msra.mxu0 0.0
    %56 = vmatpush.xpose.msra.mxu0 0.0
    %57 = vmatpush.xpose.msra.mxu0 0.0
    %58 = vmatpush.xpose.msra.mxu0 %v41
    %59 = vmatmul.f32.gmra.mxu0 %v35
    %v60 = vpop.f32.mrf.mxu0
    %v61 = vadd.f32 %v26, %v60
    %62 = vmatmul.f32.gmra.mxu0 %v38
    %v63 = vpop.f32.mrf.mxu0
    %v64 = vadd.f32 %v31, %v63
    %65 = vdwg.mxu0
    %v66 = vmax.f32 %v61, 0.0
    %v67 = vmax.f32 %v64, 0.0
    %v68 = vld [vmem:[%s3] sm:$0xff]
    %v69 = vld [vmem:[%s3 + $0x8] sm:$0xff]
    %71 = vset.pattern.permute.xlu0 0
    %72 = vperm.xlu0 %71, %v68
    %v73 = vpop.permute.xlu0 %72
    %76 = vset.pattern.permute.xlu0 0
    %77 = vperm.xlu0 %76, %v69
    %v78 = vpop.permute.xlu0 %77
    %v80 = vmul.f32 %v66, %v73
    %v81 = vmul.f32 %v67, %v78
    %vm82 = vcmask 64512
    %v83 = vsel %vm82, %v80, 0.0
    %v84 = vsel %vm82, %v81, 0.0
    %v85 = vadd.f32 %v83, %v84
    %v86 = vrot.slane %v85, 4
    %v87 = vadd.f32 %v85, %v86
    %v88 = vrot.slane %v87, 2
    %v89 = vadd.f32 %v87, %v88
    %v90 = vrot.slane %v89, 1
    %v91 = vadd.f32 %v89, %v90
    %vm92 = vcmask 57344
    %93 = vst.msk [vmem:[#allocation2] sm:$0x1] %vm92, %v91
    %p94 = scmp.eq.s32.totalorder 0, 0
    // Predicated region
    $region18: #{tpu_custom_call.1} parent=1 // pred_check
      %p95 = pneg %p94
    $region19: #{tpu_custom_call.1} parent=1 // pred_check_branch
      %97 = sbr.rel (%p95) target = $region21
    $region20: #{tpu_custom_call.1} parent=1 // pred_region
      %v98 = vld [vmem:[#allocation2] sm:$0x1]
      %v99 = vsel %vm92, %v98, -inf
      %100 = vmax.xlane.f32.xlu0 %v99
      %v101 = vpop.xlane.xlu0 %100
      %v102 = vsub.f32 %v98, %v101
      %v103 = vmul.f32 %v102, 1.442695
      %v104 = vpow.pop %v103
      %v105 = vsel %vm92, %v104, 0.0
      %106 = vadd.xlane.f32.xlu0 %v105
      %v107 = vpop.xlane.xlu0 %106
      %v108 = vrcp.pop %v107
      %v109 = vmul.f32 %v104, %v108
      %110 = vst.msk [vmem:[#allocation3] sm:$0x1] %vm92, %v109
    $region21: #{tpu_custom_call.1} parent=1 // pred_fallthru
      _
    // Predicated region
    $region22: #{tpu_custom_call.1} parent=1 // pred_check
      _
    $region23: #{tpu_custom_call.1} parent=1 // pred_check_branch
      %112 = sbr.rel (0) target = $region25
    $region24: #{tpu_custom_call.1} parent=1 // pred_region
      %114 = vsyncadd [#allocation4], 0
      %s116 = sshll.u32 [#allocation3], 4
      %s117 = int_to_ptr.vmem [resolvable:$true] %s116
      %s118 = sshll.u32 %s4, 4
      %s119 = int_to_ptr.hbm [resolvable:$true] %s118
      %121 = dma.vmem_to_hbm [thread:$0]  %s117, 16, %s119, [#allocation4]
    $region25: #{tpu_custom_call.1} parent=1 // pred_fallthru
      _
    // Predicated region
    $region26: #{tpu_custom_call.1} parent=1 // pred_check
      _
    $region27: #{tpu_custom_call.1} parent=1 // pred_check_branch
      %123 = sbr.rel (0) target = $region29
    $region28: #{tpu_custom_call.1} parent=1 // pred_region
      %125 = dma.done [#allocation4], 16
    $region29: #{tpu_custom_call.1} parent=1 // pred_fallthru
      _
    %126 = vsyncpa [#allocation4], 1

</llo_original>
